<compile_context>
chip_gen: v7x
topology: tpu7x:2x2x1
jax: 0.10.0
libtpu: 0.0.40
codegen_flags: <defaults>
</compile_context>

<pallas_src>
import jax
import jax.numpy as jnp
from jax.experimental import pallas as pl
from jax.experimental.pallas import tpu as pltpu


def _round_up(n, m):
    return ((n + m - 1) // m) * m


def _pick_b_tile(b_padded, b_tile_max):
    """Largest multiple-of-128 tile <= b_tile_max that divides b_padded exactly.

    If the whole (128-rounded) batch would otherwise be one large single tile,
    split it into two grid steps so both TensorCores get work on v7x.
    """
    target = min(b_tile_max, b_padded)
    if b_padded >= 4096 and b_padded <= b_tile_max and (b_padded // 2) % 128 == 0:
        target = b_padded // 2
    t = (target // 128) * 128
    while t > 128:
        if b_padded % t == 0:
            return t
        t -= 128
    return 128


def qmodel_kernel(xt_ref, w_ref, o_ref):
    # xt_ref: (R, b_tile)   input tile, batch lane-dense on the lane axis
    # w_ref : (A, R)        one weight row per action (grid-invariant block)
    # o_ref : (A, b_tile)   only the A live rows — no padded-row stores
    #
    # VPU formulation: unrolled rank-1 accumulate over the tiny R axis.
    #   out[a, b] = sum_r w[a, r] * x[b, r]
    acc = w_ref[:, 0:1] * xt_ref[0:1, :]           # (A,1)*(1,b_tile) -> (A,b_tile)
    for r in range(1, xt_ref.shape[0]):            # R is static & tiny -> full unroll
        acc = acc + w_ref[:, r:r + 1] * xt_ref[r:r + 1, :]
    o_ref[...] = acc


def qmodel_forward(x, w, *, b_tile_max=16384, x_transposed=False):
    """QModel forward.

    x: (B, R) float32 (or (R, B) if x_transposed=True), w: (A, R) float32.
    Returns (A*B, 1) float32, matching torch.cat([Linear_a(x) for a in actions], dim=0).
    b_tile_max: lane-tile cap; sweep ~8192 (v5e) .. 32768 (v6e/v7x).
    """
    if x_transposed:
        R, B = x.shape
    else:
        B, R = x.shape
    A, Rw = w.shape
    assert R == Rw, (R, Rw)

    # Guard: the lane tile must be a multiple of 128.
    b_tile_max = max(128, (int(b_tile_max) // 128) * 128)

    B_pad = _round_up(B, 128)
    b_tile = _pick_b_tile(B_pad, b_tile_max)
    grid = (B_pad // b_tile,)

    # Present x as (R, B_pad), lane-dense along B.  For large B the producer
    # should emit x already transposed (x_transposed=True) to avoid this pass.
    xt = x.astype(jnp.float32) if x_transposed else x.astype(jnp.float32).T
    if B_pad != B:
        xt = jnp.pad(xt, ((0, 0), (0, B_pad - B)))
    w_f = w.astype(jnp.float32)

    out_ab = pl.pallas_call(
        qmodel_kernel,
        out_shape=jax.ShapeDtypeStruct((A, B_pad), jnp.float32),
        grid=grid,
        in_specs=[
            pl.BlockSpec((R, b_tile), lambda i: (0, i)),   # x tile marches along B
            pl.BlockSpec((A, R), lambda i: (0, 0)),        # weights resident, DMA'd once
        ],
        out_specs=pl.BlockSpec((A, b_tile), lambda i: (0, i)),
        compiler_params=pltpu.CompilerParams(
            dimension_semantics=("parallel",),             # shards B across TCs (v7x)
        ),
    )(xt, w_f)

    if B_pad != B:
        out_ab = out_ab[:, :B]
    # Row-major flatten of (A, B) == torch.cat(dim=0) of per-action (B, 1) outputs.
    # Free (bitcast) when no slice was needed.
    return out_ab.reshape(A * B, 1)


if __name__ == "__main__":
    # Small shapes consistent with the module: 4 reward types, 3 actions, batch 2.
    num_reward_types = 4
    num_actions = 3
    batch = 2

    key = jax.random.PRNGKey(0)
    kx, kw = jax.random.split(key)
    x = jax.random.normal(kx, (batch, num_reward_types), dtype=jnp.float32)
    # One weight row per action (nn.Linear(R, 1, bias=False).weight is (1, R)).
    w = jax.random.normal(kw, (num_actions, num_reward_types), dtype=jnp.float32)

    fwd = jax.jit(qmodel_forward)
    out = jax.block_until_ready(fwd(x, w))

    # Pure-JAX reference mirroring the PyTorch forward (loop over actions + cat dim 0).
    ref = jnp.concatenate([x @ w[a][:, None] for a in range(num_actions)], axis=0)
    assert out.shape == (num_actions * batch, 1), out.shape
    assert jnp.allclose(out, ref, atol=1e-5, rtol=1e-5), (out, ref)

    # Literal-module numerics: QModel zero-fills its weights -> output is exactly 0.
    out_zero = jax.block_until_ready(fwd(x, jnp.zeros_like(w)))
    assert jnp.allclose(out_zero, jnp.zeros_like(out_zero))

    print("KERNEL_OK")
</pallas_src>

<mosaic_0001>
module attributes {stable_mosaic.version = 11 : i64} {
  func.func @qmodel_kernel(%arg0: i32, %arg1: memref<4x128xf32, #tpu.memory_space<vmem>>, %arg2: memref<3x4xf32, #tpu.memory_space<vmem>>, %arg3: memref<3x128xf32, #tpu.memory_space<vmem>>) attributes {dimension_semantics = [#tpu.dimension_semantics<parallel>], iteration_bounds = array<i64: 1>, scalar_prefetch = 0 : i64, scratch_operands = 0 : i64, tpu.core_type = #tpu.core_type<tc>, window_params = [{transform_indices = @transform_0, window_bounds = array<i64: 4, 128>}, {pipeline_mode = #tpu.pipeline_mode<synchronous>, transform_indices = @transform_1, window_bounds = array<i64: 3, 4>}, {transform_indices = @transform_2, window_bounds = array<i64: 3, 128>}]} {
    %c0 = arith.constant 0 : index
    %c0_0 = arith.constant 0 : index
    %0 = vector.load %arg2[%c0, %c0_0] : memref<3x4xf32, #tpu.memory_space<vmem>>, vector<3x1xf32>
    %c0_1 = arith.constant 0 : index
    %c0_2 = arith.constant 0 : index
    %1 = vector.load %arg1[%c0_1, %c0_2] : memref<4x128xf32, #tpu.memory_space<vmem>>, vector<1x128xf32>
    %2 = vector.broadcast %0 : vector<3x1xf32> to vector<3x128xf32>
    %3 = vector.broadcast %1 : vector<1x128xf32> to vector<3x128xf32>
    %4 = arith.mulf %2, %3 : vector<3x128xf32>
    %c0_3 = arith.constant 0 : index
    %c1 = arith.constant 1 : index
    %5 = vector.load %arg2[%c0_3, %c1] : memref<3x4xf32, #tpu.memory_space<vmem>>, vector<3x1xf32>
    %c1_4 = arith.constant 1 : index
    %c0_5 = arith.constant 0 : index
    %6 = vector.load %arg1[%c1_4, %c0_5] : memref<4x128xf32, #tpu.memory_space<vmem>>, vector<1x128xf32>
    %7 = vector.broadcast %5 : vector<3x1xf32> to vector<3x128xf32>
    %8 = vector.broadcast %6 : vector<1x128xf32> to vector<3x128xf32>
    %9 = arith.mulf %7, %8 : vector<3x128xf32>
    %10 = arith.addf %4, %9 : vector<3x128xf32>
    %c0_6 = arith.constant 0 : index
    %c2 = arith.constant 2 : index
    %11 = vector.load %arg2[%c0_6, %c2] : memref<3x4xf32, #tpu.memory_space<vmem>>, vector<3x1xf32>
    %c2_7 = arith.constant 2 : index
    %c0_8 = arith.constant 0 : index
    %12 = vector.load %arg1[%c2_7, %c0_8] : memref<4x128xf32, #tpu.memory_space<vmem>>, vector<1x128xf32>
    %13 = vector.broadcast %11 : vector<3x1xf32> to vector<3x128xf32>
    %14 = vector.broadcast %12 : vector<1x128xf32> to vector<3x128xf32>
    %15 = arith.mulf %13, %14 : vector<3x128xf32>
    %16 = arith.addf %10, %15 : vector<3x128xf32>
    %c0_9 = arith.constant 0 : index
    %c3 = arith.constant 3 : index
    %17 = vector.load %arg2[%c0_9, %c3] : memref<3x4xf32, #tpu.memory_space<vmem>>, vector<3x1xf32>
    %c3_10 = arith.constant 3 : index
    %c0_11 = arith.constant 0 : index
    %18 = vector.load %arg1[%c3_10, %c0_11] : memref<4x128xf32, #tpu.memory_space<vmem>>, vector<1x128xf32>
    %19 = vector.broadcast %17 : vector<3x1xf32> to vector<3x128xf32>
    %20 = vector.broadcast %18 : vector<1x128xf32> to vector<3x128xf32>
    %21 = arith.mulf %19, %20 : vector<3x128xf32>
    %22 = arith.addf %16, %21 : vector<3x128xf32>
    %c0_12 = arith.constant 0 : index
    %c0_13 = arith.constant 0 : index
    %23 = vector.load %arg3[%c0_12, %c0_13] : memref<3x128xf32, #tpu.memory_space<vmem>>, vector<3x128xf32>
    tpu.vector_store %arg3[%c0_12, %c0_13], %22 {strides = array<i32>} : memref<3x128xf32, #tpu.memory_space<vmem>>, vector<3x128xf32>,
    return
  }
  func.func @transform_0(%arg0: i32) -> (i32, i32) {
    %c0_i32 = arith.constant 0 : i32
    %c0_i32_0 = arith.constant 0 : i32
    return %c0_i32, %arg0 : i32, i32
  }
  func.func @transform_1(%arg0: i32) -> (i32, i32) {
    %c0_i32 = arith.constant 0 : i32
    %c0_i32_0 = arith.constant 0 : i32
    %c0_i32_1 = arith.constant 0 : i32
    return %c0_i32, %c0_i32_0 : i32, i32
  }
  func.func @transform_2(%arg0: i32) -> (i32, i32) {
    %c0_i32 = arith.constant 0 : i32
    %c0_i32_0 = arith.constant 0 : i32
    return %c0_i32, %arg0 : i32, i32
  }
}

</mosaic_0001>

<llo_original>
// kernel: qmodel_forward.1
$region0: #{qmodel_forward.1}
  #allocation0 [shape = 'u32[]', space=smem, size = 0x4, offset = 0x4, fixed_abs, tag = 'smem constant byte address 0x4 - core index']
  #allocation1 [shape = 'u32[144,128]{1,0:T(1,128)}', space=vmem, size = 0x12000, scoped, tag = 'internal scratch']
  %s0 = inlined_call_operand.vmem [shape: f32[4,128], index: 0, kind: input, shape index: {}]
  %s1 = inlined_call_operand.vmem [shape: f32[3,4], index: 1, kind: input, shape index: {}]
  %s2 = inlined_call_operand.vmem [shape: f32[3,128], index: 2, kind: output, shape index: {}]
  %s3 = sld [smem:[#allocation0]]
  $region18: #{qmodel_forward.1} parent=0
    _
  %s5 = ssub.s32 1, %s3
  %s6 = scalar_select 0, %s5, %s3
  // Predicated region
  $region2: #{qmodel_forward.1} parent=0 // pred_check
    _
  $region3: #{qmodel_forward.1} parent=0 // pred_check_branch
    %8 = sbr.rel (0) target = $region5
  $region4: #{qmodel_forward.1} parent=0 // pred_region
    _
  $region5: #{qmodel_forward.1} parent=0 // pred_fallthru
    _
  // Predicated region
  $region6: #{qmodel_forward.1} parent=0 // pred_check
    _
  $region7: #{qmodel_forward.1} parent=0 // pred_check_branch
    %10 = sbr.rel (0) target = $region9
  $region8: #{qmodel_forward.1} parent=0 // pred_region
    _
  $region9: #{qmodel_forward.1} parent=0 // pred_fallthru
    _
  %v11 = vld [vmem:[%s1] sm:$0x7]
  %v12 = vld [vmem:[%s0] sm:$0x1]
  %14 = vset.pattern.permute.xlu0 0
  %15 = vperm.xlu0 %14, %v11
  %v16 = vpop.permute.xlu0 %15
  %v18 = vlaneseq
  %v19 = vshrl.u32 %v18, 7
  %v20 = vsub.s32 0, %v19
  %v21 = vrot.slane %v12, %v20
  %v22 = vmul.f32 %v16, %v21
  %v23 = vld [vmem:[%s0 + $0x1] sm:$0x1]
  %24 = vset.pattern.permute.xlu0 1
  %25 = vperm.xlu0 %24, %v11
  %v26 = vpop.permute.xlu0 %25
  %v28 = vlaneseq
  %v29 = vshrl.u32 %v28, 7
  %v30 = vsub.s32 0, %v29
  %v31 = vrot.slane %v23, %v30
  %v32 = vmul.f32 %v26, %v31
  %v33 = vadd.f32 %v22, %v32
  %v34 = vld [vmem:[%s0 + $0x2] sm:$0x1]
  %35 = vset.pattern.permute.xlu0 2
  %36 = vperm.xlu0 %35, %v11
  %v37 = vpop.permute.xlu0 %36
  %v39 = vlaneseq
  %v40 = vshrl.u32 %v39, 7
  %v41 = vsub.s32 0, %v40
  %v42 = vrot.slane %v34, %v41
  %v43 = vmul.f32 %v37, %v42
  %v44 = vadd.f32 %v33, %v43
  %v45 = vld [vmem:[%s0 + $0x3] sm:$0x1]
  %46 = vset.pattern.permute.xlu0 3
  %47 = vperm.xlu0 %46, %v11
  %v48 = vpop.permute.xlu0 %47
  %v50 = vlaneseq
  %v51 = vshrl.u32 %v50, 7
  %v52 = vsub.s32 0, %v51
  %v53 = vrot.slane %v45, %v52
  %v54 = vmul.f32 %v48, %v53
  %v55 = vadd.f32 %v44, %v54
  %56 = vst [vmem:[%s2] sm:$0x7] %v55
  // Predicated region
  $region10: #{qmodel_forward.1} parent=0 // pred_check
    _
  $region11: #{qmodel_forward.1} parent=0 // pred_check_branch
    %58 = sbr.rel (0) target = $region13
  $region12: #{qmodel_forward.1} parent=0 // pred_region
    _
  $region13: #{qmodel_forward.1} parent=0 // pred_fallthru
    _
  // Predicated region
  $region14: #{qmodel_forward.1} parent=0 // pred_check
    _
  $region15: #{qmodel_forward.1} parent=0 // pred_check_branch
    %60 = sbr.rel (0) target = $region17
  $region16: #{qmodel_forward.1} parent=0 // pred_region
    _
  $region17: #{qmodel_forward.1} parent=0 // pred_fallthru
    _

</llo_original>
